<compile_context>
chip_gen: v6e
topology: v6e:2x2x1
jax: 0.10.0
libtpu: 0.0.40
codegen_flags: <defaults>
</compile_context>

<pallas_src>
import functools

import jax
import jax.numpy as jnp
from jax.experimental import pallas as pl
from jax.experimental.pallas import tpu as pltpu


def _gelu(x):
    # tanh-approximation GELU (BERT-style custom GELU() module)
    return 0.5 * x * (1.0 + jnp.tanh(0.7978845608028654 * (x + 0.044715 * x * x * x)))


def _round_up(x, m):
    return ((x + m - 1) // m) * m


def ffn_kernel(x_ref, w1_ref, b1_ref, w2_ref, b2_ref, gamma_ref, beta_ref, o_ref, acc_ref):
    hk = pl.program_id(1)
    nh = pl.num_programs(1)

    @pl.when(hk == 0)
    def _init():
        acc_ref[...] = jnp.zeros_like(acc_ref)

    # fc1 chunk + GELU: operands in their native (possibly bf16) dtype, f32 accumulation.
    x_op = x_ref[...].astype(w1_ref.dtype)
    h = jnp.dot(x_op, w1_ref[...], preferred_element_type=jnp.float32)
    h = h + b1_ref[...].astype(jnp.float32)
    h = _gelu(h)                                            # (tm, th) f32

    # fc2 partial product accumulated into f32 VMEM scratch.
    acc_ref[...] += jnp.dot(h.astype(w2_ref.dtype), w2_ref[...],
                            preferred_element_type=jnp.float32)

    @pl.when(hk == nh - 1)
    def _finalize():
        # bias + residual + LayerNorm over d_model (all f32), dropout = identity (eval).
        z = acc_ref[...] + b2_ref[...].astype(jnp.float32) + x_ref[...].astype(jnp.float32)
        mean = jnp.mean(z, axis=-1, keepdims=True)
        var = jnp.mean((z - mean) ** 2, axis=-1, keepdims=True)
        zn = (z - mean) * jax.lax.rsqrt(var + 1e-5)
        o_ref[...] = (zn * gamma_ref[...].astype(jnp.float32)
                      + beta_ref[...].astype(jnp.float32)).astype(o_ref.dtype)


@functools.partial(jax.jit, static_argnames=("tm", "th"))
def position_wise_ffnn(x, w1, b1, w2, b2, gamma, beta, *, tm=256, th=512):
    B, S, D = x.shape
    H = w1.shape[1]
    N = B * S

    # Effective row tile: large by default, clamped for tiny inputs; pad rows to a multiple.
    tm_eff = min(tm, _round_up(N, 8))
    n_pad = _round_up(N, tm_eff)

    # Effective hidden chunk: stream H in chunks of `th` when it divides evenly,
    # otherwise keep the full H resident (toy shapes).
    th_eff = th if (th <= H and H % th == 0) else H

    x2 = x.reshape(N, D)
    if n_pad != N:
        x2 = jnp.pad(x2, ((0, n_pad - N), (0, 0)))

    b1_2 = b1.reshape(1, H)
    b2_2 = b2.reshape(1, D)
    g_2 = gamma.reshape(1, D)
    be_2 = beta.reshape(1, D)

    itemsize = jnp.dtype(x.dtype).itemsize
    cost = pl.CostEstimate(
        flops=4 * N * D * H,                      # two matmuls
        transcendentals=N * H + N,                # tanh in GELU + rsqrt in LN
        bytes_accessed=(2 * N * D + 2 * D * H + H + 3 * D) * itemsize,
    )

    grid = (n_pad // tm_eff, H // th_eff)

    out = pl.pallas_call(
        ffn_kernel,
        out_shape=jax.ShapeDtypeStruct((n_pad, D), x.dtype),
        grid_spec=pltpu.PrefetchScalarGridSpec(
            num_scalar_prefetch=0,
            grid=grid,
            in_specs=[
                pl.BlockSpec((tm_eff, D), lambda i, h: (i, 0)),    # x rows (resident over H axis)
                pl.BlockSpec((D, th_eff), lambda i, h: (0, h)),    # W1 chunk
                pl.BlockSpec((1, th_eff), lambda i, h: (0, h)),    # b1 chunk
                pl.BlockSpec((th_eff, D), lambda i, h: (h, 0)),    # W2 chunk
                pl.BlockSpec((1, D), lambda i, h: (0, 0)),         # b2
                pl.BlockSpec((1, D), lambda i, h: (0, 0)),         # gamma
                pl.BlockSpec((1, D), lambda i, h: (0, 0)),         # beta
            ],
            out_specs=pl.BlockSpec((tm_eff, D), lambda i, h: (i, 0)),  # lane-dense last dim
            scratch_shapes=[pltpu.VMEM((tm_eff, D), jnp.float32)],
        ),
        compiler_params=pltpu.CompilerParams(
            dimension_semantics=("parallel", "arbitrary"),
            vmem_limit_bytes=64 * 1024 * 1024,
        ),
        cost_estimate=cost,
    )(x2, w1, b1_2, w2, b2_2, g_2, be_2)

    return out[:N].reshape(B, S, D)


def _reference(x, w1, b1, w2, b2, gamma, beta):
    h = _gelu(x @ w1 + b1)
    y = h @ w2 + b2
    z = y + x
    mean = jnp.mean(z, axis=-1, keepdims=True)
    var = jnp.mean((z - mean) ** 2, axis=-1, keepdims=True)
    return (z - mean) * jax.lax.rsqrt(var + 1e-5) * gamma + beta


if __name__ == "__main__":
    B, S, D, H = 2, 8, 32, 64
    key = jax.random.PRNGKey(0)
    kx, k1, k2, k3, k4 = jax.random.split(key, 5)

    x = jax.random.normal(kx, (B, S, D), dtype=jnp.float32)

    # PyTorch nn.Linear-style uniform init (bound = 1/sqrt(fan_in)), deterministic.
    bnd1 = 1.0 / jnp.sqrt(jnp.float32(D))
    w1 = jax.random.uniform(k1, (D, H), minval=-bnd1, maxval=bnd1, dtype=jnp.float32)
    b1 = jax.random.uniform(k2, (H,), minval=-bnd1, maxval=bnd1, dtype=jnp.float32)
    bnd2 = 1.0 / jnp.sqrt(jnp.float32(H))
    w2 = jax.random.uniform(k3, (H, D), minval=-bnd2, maxval=bnd2, dtype=jnp.float32)
    b2 = jax.random.uniform(k4, (D,), minval=-bnd2, maxval=bnd2, dtype=jnp.float32)
    gamma = jnp.ones((D,), dtype=jnp.float32)
    beta = jnp.zeros((D,), dtype=jnp.float32)

    # f32 path: exact-precision check vs reference.
    out = position_wise_ffnn(x, w1, b1, w2, b2, gamma, beta)
    out = jax.block_until_ready(out)
    ref = _reference(x, w1, b1, w2, b2, gamma, beta)
    assert out.shape == (B, S, D)
    assert jnp.allclose(out, ref, atol=1e-4, rtol=1e-4), "f32 mismatch vs reference"

    # bf16 path: same kernel, bf16 MXU operands with f32 accumulation (loose tolerance).
    to_bf16 = lambda a: a.astype(jnp.bfloat16)
    out_bf16 = position_wise_ffnn(
        to_bf16(x), to_bf16(w1), to_bf16(b1), to_bf16(w2), to_bf16(b2),
        to_bf16(gamma), to_bf16(beta))
    out_bf16 = jax.block_until_ready(out_bf16)
    assert out_bf16.shape == (B, S, D)
    assert jnp.allclose(out_bf16.astype(jnp.float32), ref, atol=1e-1, rtol=1e-1), \
        "bf16 mismatch vs reference"

    print("KERNEL_OK")
</pallas_src>

<mosaic_0001>
module attributes {stable_mosaic.version = 11 : i64} {
  func.func @ffn_kernel(%arg0: i32, %arg1: i32, %arg2: memref<16x32xf32, #tpu.memory_space<vmem>>, %arg3: memref<32x64xf32, #tpu.memory_space<vmem>>, %arg4: memref<1x64xf32, #tpu.memory_space<vmem>>, %arg5: memref<64x32xf32, #tpu.memory_space<vmem>>, %arg6: memref<1x32xf32, #tpu.memory_space<vmem>>, %arg7: memref<1x32xf32, #tpu.memory_space<vmem>>, %arg8: memref<1x32xf32, #tpu.memory_space<vmem>>, %arg9: memref<16x32xf32, #tpu.memory_space<vmem>>, %arg10: memref<16x32xf32, #tpu.memory_space<vmem>>) attributes {dimension_semantics = [#tpu.dimension_semantics<parallel>, #tpu.dimension_semantics<arbitrary>], iteration_bounds = array<i64: 1, 1>, scalar_prefetch = 0 : i64, scratch_operands = 1 : i64, tpu.core_type = #tpu.core_type<tc>, window_params = [{transform_indices = @transform_0, window_bounds = array<i64: 16, 32>}, {transform_indices = @transform_1, window_bounds = array<i64: 32, 64>}, {transform_indices = @transform_2, window_bounds = array<i64: 1, 64>}, {transform_indices = @transform_3, window_bounds = array<i64: 64, 32>}, {pipeline_mode = #tpu.pipeline_mode<synchronous>, transform_indices = @transform_4, window_bounds = array<i64: 1, 32>}, {pipeline_mode = #tpu.pipeline_mode<synchronous>, transform_indices = @transform_5, window_bounds = array<i64: 1, 32>}, {pipeline_mode = #tpu.pipeline_mode<synchronous>, transform_indices = @transform_6, window_bounds = array<i64: 1, 32>}, {transform_indices = @transform_7, window_bounds = array<i64: 16, 32>}]} {
    %c0_i32 = arith.constant 0 : i32
    %0 = arith.cmpi eq, %arg1, %c0_i32 : i32
    %1 = arith.extui %0 : i1 to i32
    %c0_i32_0 = arith.constant 0 : i32
    %2 = arith.cmpi ne, %1, %c0_i32_0 : i32
    scf.if %2 {
      %cst_19 = arith.constant 0.000000e+00 : f32
      %30 = vector.broadcast %cst_19 : f32 to vector<16x32xf32>
      %c0_20 = arith.constant 0 : index
      %c0_21 = arith.constant 0 : index
      %31 = vector.load %arg10[%c0_20, %c0_21] : memref<16x32xf32, #tpu.memory_space<vmem>>, vector<16x32xf32>
      tpu.vector_store %arg10[%c0_20, %c0_21], %30 {strides = array<i32>} : memref<16x32xf32, #tpu.memory_space<vmem>>, vector<16x32xf32>,
    } else {
    }
    %c0 = arith.constant 0 : index
    %c0_1 = arith.constant 0 : index
    %3 = vector.load %arg2[%c0, %c0_1] : memref<16x32xf32, #tpu.memory_space<vmem>>, vector<16x32xf32>
    %c0_2 = arith.constant 0 : index
    %c0_3 = arith.constant 0 : index
    %4 = vector.load %arg3[%c0_2, %c0_3] : memref<32x64xf32, #tpu.memory_space<vmem>>, vector<32x64xf32>
    %cst = arith.constant dense<0.000000e+00> : vector<16x64xf32>
    %5 = tpu.matmul %3, %4, %cst {dimension_numbers = #tpu.dot_dimension_numbers<[1], [0], [0], [1], [0, 0, 1, 1], [], []>} : vector<16x32xf32>, vector<32x64xf32>, vector<16x64xf32> -> vector<16x64xf32>
    %c0_4 = arith.constant 0 : index
    %c0_5 = arith.constant 0 : index
    %6 = vector.load %arg4[%c0_4, %c0_5] : memref<1x64xf32, #tpu.memory_space<vmem>>, vector<1x64xf32>
    %7 = vector.broadcast %6 : vector<1x64xf32> to vector<16x64xf32>
    %8 = arith.addf %5, %7 : vector<16x64xf32>
    %cst_6 = arith.constant 5.000000e-01 : f32
    %9 = vector.broadcast %cst_6 : f32 to vector<16x64xf32>
    %10 = arith.mulf %9, %8 : vector<16x64xf32>
    %cst_7 = arith.constant 4.471500e-02 : f32
    %11 = vector.broadcast %cst_7 : f32 to vector<16x64xf32>
    %12 = arith.mulf %11, %8 : vector<16x64xf32>
    %13 = arith.mulf %12, %8 : vector<16x64xf32>
    %14 = arith.mulf %13, %8 : vector<16x64xf32>
    %15 = arith.addf %8, %14 : vector<16x64xf32>
    %cst_8 = arith.constant 0.797884583 : f32
    %16 = vector.broadcast %cst_8 : f32 to vector<16x64xf32>
    %17 = arith.mulf %16, %15 : vector<16x64xf32>
    %18 = math.tanh %17 : vector<16x64xf32>
    %cst_9 = arith.constant 1.000000e+00 : f32
    %19 = vector.broadcast %cst_9 : f32 to vector<16x64xf32>
    %20 = arith.addf %19, %18 : vector<16x64xf32>
    %21 = arith.mulf %10, %20 : vector<16x64xf32>
    %c0_10 = arith.constant 0 : index
    %c0_11 = arith.constant 0 : index
    %22 = vector.load %arg10[%c0_10, %c0_11] : memref<16x32xf32, #tpu.memory_space<vmem>>, vector<16x32xf32>
    %c0_12 = arith.constant 0 : index
    %c0_13 = arith.constant 0 : index
    %23 = vector.load %arg5[%c0_12, %c0_13] : memref<64x32xf32, #tpu.memory_space<vmem>>, vector<64x32xf32>
    %cst_14 = arith.constant dense<0.000000e+00> : vector<16x32xf32>
    %24 = tpu.matmul %21, %23, %cst_14 {dimension_numbers = #tpu.dot_dimension_numbers<[1], [0], [0], [1], [0, 0, 1, 1], [], []>} : vector<16x64xf32>, vector<64x32xf32>, vector<16x32xf32> -> vector<16x32xf32>
    %25 = arith.addf %22, %24 : vector<16x32xf32>
    %c0_15 = arith.constant 0 : index
    %c0_16 = arith.constant 0 : index
    %26 = vector.load %arg10[%c0_15, %c0_16] : memref<16x32xf32, #tpu.memory_space<vmem>>, vector<16x32xf32>
    tpu.vector_store %arg10[%c0_15, %c0_16], %25 {strides = array<i32>} : memref<16x32xf32, #tpu.memory_space<vmem>>, vector<16x32xf32>,
    %c0_i32_17 = arith.constant 0 : i32
    %27 = arith.cmpi eq, %arg1, %c0_i32_17 : i32
    %28 = arith.extui %27 : i1 to i32
    %c0_i32_18 = arith.constant 0 : i32
    %29 = arith.cmpi ne, %28, %c0_i32_18 : i32
    scf.if %29 {
      %c0_19 = arith.constant 0 : index
      %c0_20 = arith.constant 0 : index
      %30 = vector.load %arg10[%c0_19, %c0_20] : memref<16x32xf32, #tpu.memory_space<vmem>>, vector<16x32xf32>
      %c0_21 = arith.constant 0 : index
      %c0_22 = arith.constant 0 : index
      %31 = vector.load %arg6[%c0_21, %c0_22] : memref<1x32xf32, #tpu.memory_space<vmem>>, vector<1x32xf32>
      %32 = vector.broadcast %31 : vector<1x32xf32> to vector<16x32xf32>
      %33 = arith.addf %30, %32 : vector<16x32xf32>
      %c0_23 = arith.constant 0 : index
      %c0_24 = arith.constant 0 : index
      %34 = vector.load %arg2[%c0_23, %c0_24] : memref<16x32xf32, #tpu.memory_space<vmem>>, vector<16x32xf32>
      %35 = arith.addf %33, %34 : vector<16x32xf32>
      %cst_25 = arith.constant dense<0.000000e+00> : vector<16xf32>
      %36 = vector.multi_reduction <add>, %35, %cst_25 [1] : vector<16x32xf32> to vector<16xf32>
      %37 = vector.shape_cast %36 : vector<16xf32> to vector<16x1xf32>
      %cst_26 = arith.constant 3.200000e+01 : f32
      %38 = vector.broadcast %cst_26 : f32 to vector<16x1xf32>
      %39 = arith.divf %37, %38 : vector<16x1xf32>
      %40 = vector.broadcast %39 : vector<16x1xf32> to vector<16x32xf32>
      %41 = arith.subf %35, %40 : vector<16x32xf32>
      %42 = arith.mulf %41, %41 : vector<16x32xf32>
      %cst_27 = arith.constant dense<0.000000e+00> : vector<16xf32>
      %43 = vector.multi_reduction <add>, %42, %cst_27 [1] : vector<16x32xf32> to vector<16xf32>
      %44 = vector.shape_cast %43 : vector<16xf32> to vector<16x1xf32>
      %cst_28 = arith.constant 3.200000e+01 : f32
      %45 = vector.broadcast %cst_28 : f32 to vector<16x1xf32>
      %46 = arith.divf %44, %45 : vector<16x1xf32>
      %47 = vector.broadcast %39 : vector<16x1xf32> to vector<16x32xf32>
      %48 = arith.subf %35, %47 : vector<16x32xf32>
      %cst_29 = arith.constant 9.99999974E-6 : f32
      %49 = vector.broadcast %cst_29 : f32 to vector<16x1xf32>
      %50 = arith.addf %46, %49 : vector<16x1xf32>
      %51 = math.rsqrt %50 : vector<16x1xf32>
      %52 = vector.broadcast %51 : vector<16x1xf32> to vector<16x32xf32>
      %53 = arith.mulf %48, %52 : vector<16x32xf32>
      %c0_30 = arith.constant 0 : index
      %c0_31 = arith.constant 0 : index
      %54 = vector.load %arg7[%c0_30, %c0_31] : memref<1x32xf32, #tpu.memory_space<vmem>>, vector<1x32xf32>
      %55 = vector.broadcast %54 : vector<1x32xf32> to vector<16x32xf32>
      %56 = arith.mulf %53, %55 : vector<16x32xf32>
      %c0_32 = arith.constant 0 : index
      %c0_33 = arith.constant 0 : index
      %57 = vector.load %arg8[%c0_32, %c0_33] : memref<1x32xf32, #tpu.memory_space<vmem>>, vector<1x32xf32>
      %58 = vector.broadcast %57 : vector<1x32xf32> to vector<16x32xf32>
      %59 = arith.addf %56, %58 : vector<16x32xf32>
      %c0_34 = arith.constant 0 : index
      %c0_35 = arith.constant 0 : index
      %60 = vector.load %arg9[%c0_34, %c0_35] : memref<16x32xf32, #tpu.memory_space<vmem>>, vector<16x32xf32>
      tpu.vector_store %arg9[%c0_34, %c0_35], %59 {strides = array<i32>} : memref<16x32xf32, #tpu.memory_space<vmem>>, vector<16x32xf32>,
    } else {
    }
    return
  }
  func.func @transform_0(%arg0: i32, %arg1: i32) -> (i32, i32) {
    %c0_i32 = arith.constant 0 : i32
    %c0_i32_0 = arith.constant 0 : i32
    return %arg0, %c0_i32 : i32, i32
  }
  func.func @transform_1(%arg0: i32, %arg1: i32) -> (i32, i32) {
    %c0_i32 = arith.constant 0 : i32
    %c0_i32_0 = arith.constant 0 : i32
    return %c0_i32, %arg1 : i32, i32
  }
  func.func @transform_2(%arg0: i32, %arg1: i32) -> (i32, i32) {
    %c0_i32 = arith.constant 0 : i32
    %c0_i32_0 = arith.constant 0 : i32
    return %c0_i32, %arg1 : i32, i32
  }
  func.func @transform_3(%arg0: i32, %arg1: i32) -> (i32, i32) {
    %c0_i32 = arith.constant 0 : i32
    %c0_i32_0 = arith.constant 0 : i32
    return %arg1, %c0_i32 : i32, i32
  }
  func.func @transform_4(%arg0: i32, %arg1: i32) -> (i32, i32) {
    %c0_i32 = arith.constant 0 : i32
    %c0_i32_0 = arith.constant 0 : i32
    %c0_i32_1 = arith.constant 0 : i32
    return %c0_i32, %c0_i32_0 : i32, i32
  }
  func.func @transform_5(%arg0: i32, %arg1: i32) -> (i32, i32) {
    %c0_i32 = arith.constant 0 : i32
    %c0_i32_0 = arith.constant 0 : i32
    %c0_i32_1 = arith.constant 0 : i32
    return %c0_i32, %c0_i32_0 : i32, i32
  }
  func.func @transform_6(%arg0: i32, %arg1: i32) -> (i32, i32) {
    %c0_i32 = arith.constant 0 : i32
    %c0_i32_0 = arith.constant 0 : i32
    %c0_i32_1 = arith.constant 0 : i32
    return %c0_i32, %c0_i32_0 : i32, i32
  }
  func.func @transform_7(%arg0: i32, %arg1: i32) -> (i32, i32) {
    %c0_i32 = arith.constant 0 : i32
    %c0_i32_0 = arith.constant 0 : i32
    return %arg0, %c0_i32 : i32, i32
  }
}

</mosaic_0001>

<llo_original>
// kernel: position_wise_ffnn.1
$region0: #{position_wise_ffnn.1}
  #allocation0 [shape = 'u32[]', space=smem, size = 0x4, offset = 0x4, fixed_abs, tag = 'smem constant byte address 0x4 - core index']
  #allocation1 [shape = 'u32[144,128]{1,0:T(1,128)}', space=vmem, size = 0x12000, scoped, tag = 'internal scratch']
  #allocation2 [shape = 'f32[16,32]{1,0:T(8,128)}', space=vmem, size = 0x2000, scoped, tag = 'scratch operand']
  %s0 = inlined_call_operand.vmem [shape: f32[16,32], index: 0, kind: input, shape index: {}]
  %s1 = inlined_call_operand.vmem [shape: f32[32,64], index: 1, kind: input, shape index: {}]
  %s2 = inlined_call_operand.vmem [shape: f32[1,64], index: 2, kind: input, shape index: {}]
  %s3 = inlined_call_operand.vmem [shape: f32[64,32], index: 3, kind: input, shape index: {}]
  %s4 = inlined_call_operand.vmem [shape: f32[1,32], index: 4, kind: input, shape index: {}]
  %s5 = inlined_call_operand.vmem [shape: f32[1,32], index: 5, kind: input, shape index: {}]
  %s6 = inlined_call_operand.vmem [shape: f32[1,32], index: 6, kind: input, shape index: {}]
  %s7 = inlined_call_operand.hbm [shape: f32[16,32], index: 7, kind: output, shape index: {}]
  %s8 = sld [smem:[#allocation0]]
  $region46: #{position_wise_ffnn.1} parent=0
    _
  %s10 = ssub.s32 1, %s8
  %s11 = scalar_select 0, %s10, %s8
  $region1: #{position_wise_ffnn.1} parent=0
    #allocation3 [shape = 'u8[8192]{0}', space=vmem, size = 0x2000, scoped, tag = 'output window, operand 0, single buffered']
    #allocation4 [shape = 's32[1]{0}', space=sflag, size = 0x4, scoped, tag = 'scoped memory for position_wise_ffnn.1']
    %12 = vsyncpa [#allocation4], 0
    // Predicated region
    $region2: #{position_wise_ffnn.1} parent=1 // pred_check
      _
    $region3: #{position_wise_ffnn.1} parent=1 // pred_check_branch
      %14 = sbr.rel (0) target = $region5
    $region4: #{position_wise_ffnn.1} parent=1 // pred_region
      _
    $region5: #{position_wise_ffnn.1} parent=1 // pred_fallthru
      _
    // Predicated region
    $region6: #{position_wise_ffnn.1} parent=1 // pred_check
      _
    $region7: #{position_wise_ffnn.1} parent=1 // pred_check_branch
      %16 = sbr.rel (0) target = $region9
    $region8: #{position_wise_ffnn.1} parent=1 // pred_region
      _
    $region9: #{position_wise_ffnn.1} parent=1 // pred_fallthru
      _
    // Predicated region
    $region10: #{position_wise_ffnn.1} parent=1 // pred_check
      _
    $region11: #{position_wise_ffnn.1} parent=1 // pred_check_branch
      %18 = sbr.rel (0) target = $region13
    $region12: #{position_wise_ffnn.1} parent=1 // pred_region
      _
    $region13: #{position_wise_ffnn.1} parent=1 // pred_fallthru
      _
    // Predicated region
    $region14: #{position_wise_ffnn.1} parent=1 // pred_check
      _
    $region15: #{position_wise_ffnn.1} parent=1 // pred_check_branch
      %20 = sbr.rel (0) target = $region17
    $region16: #{position_wise_ffnn.1} parent=1 // pred_region
      _
    $region17: #{position_wise_ffnn.1} parent=1 // pred_fallthru
      _
    // Predicated region
    $region18: #{position_wise_ffnn.1} parent=1 // pred_check
      _
    $region19: #{position_wise_ffnn.1} parent=1 // pred_check_branch
      %22 = sbr.rel (0) target = $region21
    $region20: #{position_wise_ffnn.1} parent=1 // pred_region
      _
    $region21: #{position_wise_ffnn.1} parent=1 // pred_fallthru
      _
    // Predicated region
    $region22: #{position_wise_ffnn.1} parent=1 // pred_check
      _
    $region23: #{position_wise_ffnn.1} parent=1 // pred_check_branch
      %24 = sbr.rel (0) target = $region25
    $region24: #{position_wise_ffnn.1} parent=1 // pred_region
      _
    $region25: #{position_wise_ffnn.1} parent=1 // pred_fallthru
      _
    // Predicated region
    $region26: #{position_wise_ffnn.1} parent=1 // pred_check
      _
    $region27: #{position_wise_ffnn.1} parent=1 // pred_check_branch
      %26 = sbr.rel (0) target = $region29
    $region28: #{position_wise_ffnn.1} parent=1 // pred_region
      _
    $region29: #{position_wise_ffnn.1} parent=1 // pred_fallthru
      _
    %p27 = scmp.eq.s32.totalorder 0, 0
    // Predicated region
    $region30: #{position_wise_ffnn.1} parent=1 // pred_check
      %p28 = pneg %p27
    $region31: #{position_wise_ffnn.1} parent=1 // pred_check_branch
      %30 = sbr.rel (%p28) target = $region33
    $region32: #{position_wise_ffnn.1} parent=1 // pred_region
      %vm31 = vcmask 261120
      %32 = vst.msk [vmem:[#allocation2] sm:$0xff] %vm31, 0.0
      %33 = vst.msk [vmem:[#allocation2 + $0x8] sm:$0xff] %vm31, 0.0
    $region33: #{position_wise_ffnn.1} parent=1 // pred_fallthru
      _
    %v34 = vld [vmem:[%s0] sm:$0xff]
    %v35 = vld [vmem:[%s0 + $0x8] sm:$0xff]
    %v36 = vld [vmem:[%s1] sm:$0xff]
    %v37 = vld [vmem:[%s1 + $0x8] sm:$0xff]
    %v38 = vld [vmem:[%s1 + $0x10] sm:$0xff]
    %v39 = vld [vmem:[%s1 + $0x18] sm:$0xff]
    %v40 = vld [vmem:[%s2] sm:$0x1]
    %v42 = vlaneseq
    %v43 = vshrl.u32 %v42, 7
    %v44 = vsub.s32 0, %v43
    %v45 = vrot.slane %v40, %v44
    %vm47 = vcmask 261120
    %v49 = vsel %vm47, %v34, 0
    %v52 = vsel %vm47, %v35, 0
    %54 = vmatprep.subr.mxu0 0.0
    %55 = vmatpush1.msra.mxu0 0.0
    %56 = vmatprep.subr.mxu0 0.0
    %57 = vmatpush1.msra.mxu0 0.0
    %58 = vmatprep.subr.mxu0 0.0
    %59 = vmatpush1.msra.mxu0 0.0
    %60 = vmatprep.subr.mxu0 0.0
    %61 = vmatpush1.msra.mxu0 0.0
    %62 = vmatprep.subr.mxu0 0.0
    %63 = vmatpush1.msra.mxu0 0.0
    %64 = vmatprep.subr.mxu0 0.0
    %65 = vmatpush1.msra.mxu0 0.0
    %66 = vmatprep.subr.mxu0 0.0
    %67 = vmatpush1.msra.mxu0 0.0
    %68 = vmatprep.subr.mxu0 0.0
    %69 = vmatpush1.msra.mxu0 0.0
    %70 = vmatprep.subr.mxu0 0.0
    %71 = vmatpush1.msra.mxu0 0.0
    %72 = vmatprep.subr.mxu0 0.0
    %73 = vmatpush1.msra.mxu0 0.0
    %74 = vmatprep.subr.mxu0 0.0
    %75 = vmatpush1.msra.mxu0 0.0
    %76 = vmatprep.subr.mxu0 0.0
    %77 = vmatpush1.msra.mxu0 0.0
    %78 = vmatprep.subr.mxu0 0.0
    %79 = vmatpush1.msra.mxu0 %v39
    %80 = vmatprep.subr.mxu0 0.0
    %81 = vmatpush1.msra.mxu0 %v38
    %82 = vmatprep.subr.mxu0 0.0
    %83 = vmatpush1.msra.mxu0 %v37
    %84 = vmatprep.subr.mxu0 0.0
    %85 = vmatpush1.msra.mxu0 %v36
    %86 = vmatprep.subr.mxu0 0.0
    %87 = vmatpush2.msra.mxu0 0.0
    %88 = vmatprep.subr.mxu0 0.0
    %89 = vmatpush2.msra.mxu0 0.0
    %90 = vmatprep.subr.mxu0 0.0
    %91 = vmatpush2.msra.mxu0 0.0
    %92 = vmatprep.subr.mxu0 0.0
    %93 = vmatpush2.msra.mxu0 0.0
    %94 = vmatprep.subr.mxu0 0.0
    %95 = vmatpush2.msra.mxu0 0.0
    %96 = vmatprep.subr.mxu0 0.0
    %97 = vmatpush2.msra.mxu0 0.0
    %98 = vmatprep.subr.mxu0 0.0
    %99 = vmatpush2.msra.mxu0 0.0
    %100 = vmatprep.subr.mxu0 0.0
    %101 = vmatpush2.msra.mxu0 0.0
    %102 = vmatprep.subr.mxu0 0.0
    %103 = vmatpush2.msra.mxu0 0.0
    %104 = vmatprep.subr.mxu0 0.0
    %105 = vmatpush2.msra.mxu0 0.0
    %106 = vmatprep.subr.mxu0 0.0
    %107 = vmatpush2.msra.mxu0 0.0
    %108 = vmatprep.subr.mxu0 0.0
    %109 = vmatpush2.msra.mxu0 0.0
    %110 = vmatprep.subr.mxu0 0.0
    %111 = vmatpush2.msra.mxu0 0.0
    %112 = vmatprep.subr.mxu0 0.0
    %113 = vmatpush2.msra.mxu0 0.0
    %114 = vmatprep.subr.mxu0 0.0
    %115 = vmatpush2.msra.mxu0 0.0
    %116 = vmatprep.subr.mxu0 0.0
    %117 = vmatpush2.msra.mxu0 0.0
    %118 = vmatprep.mubr.f32.mxu0 0.0
    %119 = vmatmul.mubr.f32.gmra.mxu0 %v49
    %v120 = vpop.f32.mrf.mxu0
    %v121 = vadd.f32 %v45, %v120
    %v122 = vpop.f32.mrf.mxu0
    %123 = vmatprep.mubr.f32.mxu0 0.0
    %124 = vmatmul.mubr.f32.gmra.mxu0 %v52
    %v125 = vpop.f32.mrf.mxu0
    %v126 = vadd.f32 %v45, %v125
    %v127 = vpop.f32.mrf.mxu0
    %128 = vdwg.mxu0
    %v129 = vmul.f32 %v121, 0.5
    %v130 = vmul.f32 %v126, 0.5
    %v131 = vmul.f32 %v121, 0.044715
    %v132 = vmul.f32 %v126, 0.044715
    %v133 = vmul.f32 %v131, %v121
    %v134 = vmul.f32 %v132, %v126
    %v135 = vmul.f32 %v133, %v121
    %v136 = vmul.f32 %v134, %v126
    %v137 = vadd.f32 %v121, %v135
    %v138 = vadd.f32 %v126, %v136
    %v139 = vmul.f32 %v137, 0.7978846
    %v140 = vmul.f32 %v138, 0.7978846
    %v141 = vtanh.pop %v139
    %v142 = vtanh.pop %v140
    %v143 = vadd.f32 %v141, 1.0
    %v144 = vadd.f32 %v142, 1.0
    %v145 = vmul.f32 %v129, %v143
    %v146 = vmul.f32 %v130, %v144
    %v147 = vld [vmem:[#allocation2] sm:$0xff]
    %v148 = vld [vmem:[#allocation2 + $0x8] sm:$0xff]
    %v149 = vld [vmem:[%s3] sm:$0xff]
    %v150 = vld [vmem:[%s3 + $0x8] sm:$0xff]
    %v151 = vld [vmem:[%s3 + $0x10] sm:$0xff]
    %v152 = vld [vmem:[%s3 + $0x18] sm:$0xff]
    %v153 = vld [vmem:[%s3 + $0x20] sm:$0xff]
    %v154 = vld [vmem:[%s3 + $0x28] sm:$0xff]
    %v155 = vld [vmem:[%s3 + $0x30] sm:$0xff]
    %v156 = vld [vmem:[%s3 + $0x38] sm:$0xff]
    %vm157 = vcmask 523264
    %v159 = vsel %vm157, %v145, 0
    %v162 = vsel %vm157, %v146, 0
    %164 = vmatprep.subr.mxu0 0.0
    %165 = vmatpush1.msra.mxu0 0.0
    %166 = vmatprep.subr.mxu0 0.0
    %167 = vmatpush1.msra.mxu0 0.0
    %168 = vmatprep.subr.mxu0 0.0
    %169 = vmatpush1.msra.mxu0 0.0
    %170 = vmatprep.subr.mxu0 0.0
    %171 = vmatpush1.msra.mxu0 0.0
    %172 = vmatprep.subr.mxu0 0.0
    %173 = vmatpush1.msra.mxu0 0.0
    %174 = vmatprep.subr.mxu0 0.0
    %175 = vmatpush1.msra.mxu0 0.0
    %176 = vmatprep.subr.mxu0 0.0
    %177 = vmatpush1.msra.mxu0 0.0
    %178 = vmatprep.subr.mxu0 0.0
    %179 = vmatpush1.msra.mxu0 0.0
    %180 = vmatprep.subr.mxu0 0.0
    %181 = vmatpush1.msra.mxu0 %v156
    %182 = vmatprep.subr.mxu0 0.0
    %183 = vmatpush1.msra.mxu0 %v155
    %184 = vmatprep.subr.mxu0 0.0
    %185 = vmatpush1.msra.mxu0 %v154
    %186 = vmatprep.subr.mxu0 0.0
    %187 = vmatpush1.msra.mxu0 %v153
    %188 = vmatprep.subr.mxu0 0.0
    %189 = vmatpush1.msra.mxu0 %v152
    %190 = vmatprep.subr.mxu0 0.0
    %191 = vmatpush1.msra.mxu0 %v151
    %192 = vmatprep.subr.mxu0 0.0
    %193 = vmatpush1.msra.mxu0 %v150
    %194 = vmatprep.subr.mxu0 0.0
    %195 = vmatpush1.msra.mxu0 %v149
    %196 = vmatprep.subr.mxu0 0.0
    %197 = vmatpush2.msra.mxu0 0.0
    %198 = vmatprep.subr.mxu0 0.0
    %199 = vmatpush2.msra.mxu0 0.0
    %200 = vmatprep.subr.mxu0 0.0
    %201 = vmatpush2.msra.mxu0 0.0
    %202 = vmatprep.subr.mxu0 0.0
    %203 = vmatpush2.msra.mxu0 0.0
    %204 = vmatprep.subr.mxu0 0.0
    %205 = vmatpush2.msra.mxu0 0.0
    %206 = vmatprep.subr.mxu0 0.0
    %207 = vmatpush2.msra.mxu0 0.0
    %208 = vmatprep.subr.mxu0 0.0
    %209 = vmatpush2.msra.mxu0 0.0
    %210 = vmatprep.subr.mxu0 0.0
    %211 = vmatpush2.msra.mxu0 0.0
    %212 = vmatprep.subr.mxu0 0.0
    %213 = vmatpush2.msra.mxu0 0.0
    %214 = vmatprep.subr.mxu0 0.0
    %215 = vmatpush2.msra.mxu0 0.0
    %216 = vmatprep.subr.mxu0 0.0
    %217 = vmatpush2.msra.mxu0 0.0
    %218 = vmatprep.subr.mxu0 0.0
    %219 = vmatpush2.msra.mxu0 0.0
    %220 = vmatprep.subr.mxu0 0.0
    %221 = vmatpush2.msra.mxu0 0.0
    %222 = vmatprep.subr.mxu0 0.0
    %223 = vmatpush2.msra.mxu0 0.0
    %224 = vmatprep.subr.mxu0 0.0
    %225 = vmatpush2.msra.mxu0 0.0
    %226 = vmatprep.subr.mxu0 0.0
    %227 = vmatpush2.msra.mxu0 0.0
    %228 = vmatprep.mubr.f32.mxu0 0.0
    %229 = vmatmul.mubr.f32.gmra.mxu0 %v159
    %v230 = vpop.f32.mrf.mxu0
    %v231 = vadd.f32 0.0, %v230
    %v232 = vpop.f32.mrf.mxu0
    %233 = vmatprep.mubr.f32.mxu0 0.0
    %234 = vmatmul.mubr.f32.gmra.mxu0 %v162
    %v235 = vpop.f32.mrf.mxu0
    %v236 = vadd.f32 0.0, %v235
    %v237 = vpop.f32.mrf.mxu0
    %238 = vdwg.mxu0
    %v239 = vadd.f32 %v147, %v231
    %v240 = vadd.f32 %v148, %v236
    %241 = vst.msk [vmem:[#allocation2] sm:$0xff] %vm47, %v239
    %242 = vst.msk [vmem:[#allocation2 + $0x8] sm:$0xff] %vm47, %v240
    // Predicated region
    $region34: #{position_wise_ffnn.1} parent=1 // pred_check
      %p243 = pneg %p27
    $region35: #{position_wise_ffnn.1} parent=1 // pred_check_branch
      %245 = sbr.rel (%p243) target = $region37
    $region36: #{position_wise_ffnn.1} parent=1 // pred_region
      %v246 = vld [vmem:[#allocation2] sm:$0xff]
      %v247 = vld [vmem:[#allocation2 + $0x8] sm:$0xff]
      %v248 = vld [vmem:[%s4] sm:$0x1]
      %v250 = vlaneseq
      %v251 = vshrl.u32 %v250, 7
      %v252 = vsub.s32 0, %v251
      %v253 = vrot.slane %v248, %v252
      %v255 = vadd.f32 %v246, %v253
      %v256 = vadd.f32 %v247, %v253
      %v257 = vld [vmem:[%s0] sm:$0xff]
      %v258 = vld [vmem:[%s0 + $0x8] sm:$0xff]
      %v259 = vadd.f32 %v255, %v257
      %v260 = vadd.f32 %v256, %v258
      %v261 = vsel %vm47, %v259, 0.0
      %262 = vadd.xlane.f32.xlu0 %v261
      %v263 = vpop.xlane.xlu0 %262
      %v264 = vsel %vm47, %v260, 0.0
      %265 = vadd.xlane.f32.xlu0 %v264
      %v266 = vpop.xlane.xlu0 %265
      %v267 = vrcp.pop 32.0
      %v268 = vmul.f32 %v263, %v267
      %v269 = vmul.f32 %v266, %v267
      %v270 = vsub.f32 %v259, %v268
      %v271 = vsub.f32 %v260, %v269
      %v272 = vmul.f32 %v270, %v270
      %v273 = vmul.f32 %v271, %v271
      %v274 = vsel %vm47, %v272, 0.0
      %275 = vadd.xlane.f32.xlu0 %v274
      %v276 = vpop.xlane.xlu0 %275
      %v277 = vsel %vm47, %v273, 0.0
      %278 = vadd.xlane.f32.xlu0 %v277
      %v279 = vpop.xlane.xlu0 %278
      %v280 = vmul.f32 %v276, %v267
      %v281 = vmul.f32 %v279, %v267
      %v282 = vadd.f32 %v280, 1e-05
      %v283 = vadd.f32 %v281, 1e-05
      %v284 = vrsqrt.pop %v282
      %v285 = vrsqrt.pop %v283
      %v286 = vmul.f32 %v270, %v284
      %v287 = vmul.f32 %v271, %v285
      %v288 = vld [vmem:[%s5] sm:$0x1]
      %v290 = vlaneseq
      %v291 = vshrl.u32 %v290, 7
      %v292 = vsub.s32 0, %v291
      %v293 = vrot.slane %v288, %v292
      %v295 = vmul.f32 %v286, %v293
      %v296 = vmul.f32 %v287, %v293
      %v297 = vld [vmem:[%s6] sm:$0x1]
      %v299 = vlaneseq
      %v300 = vshrl.u32 %v299, 7
      %v301 = vsub.s32 0, %v300
      %v302 = vrot.slane %v297, %v301
      %v304 = vadd.f32 %v295, %v302
      %v305 = vadd.f32 %v296, %v302
      %306 = vst.msk [vmem:[#allocation3] sm:$0xff] %vm47, %v304
      %307 = vst.msk [vmem:[#allocation3 + $0x8] sm:$0xff] %vm47, %v305
    $region37: #{position_wise_ffnn.1} parent=1 // pred_fallthru
      _
    // Predicated region
    $region38: #{position_wise_ffnn.1} parent=1 // pred_check
      _
    $region39: #{position_wise_ffnn.1} parent=1 // pred_check_branch
      %309 = sbr.rel (0) target = $region41
    $region40: #{position_wise_ffnn.1} parent=1 // pred_region
      %s311 = ssub.s32 256, 256
      %312 = vsyncadd [#allocation4], %s311
      %s313 = sshll.u32 [#allocation3], 4
      %s314 = int_to_ptr.vmem [resolvable:$true] %s313
      %319 = dma.vmem_to_hbm [thread:$0]  %s314, 256, %s7, [#allocation4], 128, 128, 8
    $region41: #{position_wise_ffnn.1} parent=1 // pred_fallthru
      _
    // Predicated region
    $region42: #{position_wise_ffnn.1} parent=1 // pred_check
      _
    $region43: #{position_wise_ffnn.1} parent=1 // pred_check_branch
      %321 = sbr.rel (0) target = $region45
    $region44: #{position_wise_ffnn.1} parent=1 // pred_region
      %322 = dma.done [#allocation4], 256
    $region45: #{position_wise_ffnn.1} parent=1 // pred_fallthru
      _
    %323 = vsyncpa [#allocation4], 1

</llo_original>
